<compile_context>
chip_gen: v7x
topology: tpu7x:2x2x1
jax: 0.10.0
libtpu: 0.0.40
codegen_flags: <defaults>
</compile_context>

<pallas_src>
import functools

import jax
import jax.numpy as jnp
from jax.experimental import pallas as pl
from jax.experimental.pallas import tpu as pltpu


# ------------------------------ helpers ------------------------------------ #
def _round_up(x, m):
    return ((x + m - 1) // m) * m


def _pick_tile(dim, target, align):
    """Largest divisor of `dim` that is <= target and a multiple of `align`;
    falls back to the full dimension (full-extent block is always legal)."""
    if dim <= target:
        return dim
    start = target - (target % align)
    for t in range(start, 0, -align):
        if dim % t == 0:
            return t
    return dim


def _device_tile_defaults():
    """Generation-specific (tm_target, tf_target, vmem_limit_bytes) for bf16."""
    try:
        kind = jax.devices()[0].device_kind.lower()
    except Exception:  # pragma: no cover - defensive
        kind = ""
    if any(s in kind for s in ("v7", "7x")):
        # 64 MiB VMEM per TC: smaller budget, MXU-native 256-wide tf.
        return 512, 256, 48 * 1024 * 1024
    if "v6" in kind:
        return 1024, 1024, 100 * 1024 * 1024
    if "v5" in kind:
        return 512, 1024, 96 * 1024 * 1024
    return 512, 256, 48 * 1024 * 1024


# ------------------------------ router kernel ------------------------------ #
def _router_kernel(x_ref, wr_ref, logits_ref):
    # x: (tm, H), wr: (H, E) -> logits: (tm, E) in f32
    logits_ref[...] = jnp.dot(
        x_ref[...], wr_ref[...], preferred_element_type=jnp.float32
    )


def router_logits_pallas(x, w_router_t, tm):
    T, H = x.shape
    E = w_router_t.shape[1]
    return pl.pallas_call(
        _router_kernel,
        out_shape=jax.ShapeDtypeStruct((T, E), jnp.float32),
        grid_spec=pltpu.PrefetchScalarGridSpec(
            num_scalar_prefetch=0,
            grid=(T // tm,),
            in_specs=[
                pl.BlockSpec((tm, H), lambda i: (i, 0)),   # token tile
                pl.BlockSpec((H, E), lambda i: (0, 0)),    # resident router W
            ],
            out_specs=pl.BlockSpec((tm, E), lambda i: (i, 0)),
        ),
        compiler_params=pltpu.CompilerParams(
            dimension_semantics=("parallel",)
        ),
    )(x, w_router_t)


# -------------------------------- MoE kernel ------------------------------- #
def _moe_kernel(flags_ref, x_ref, wg_ref, wu_ref, wd_ref, rw_ref, out_ref,
                acc_ref, w_sc):
    # Grid: (token tile i [parallel], expert e [arbitrary], ffn tile f [arbitrary])
    # flags: (n_t, E) int32 in SMEM (scalar prefetch) - 0 => no routed token
    # x:     (tm, H)      resident token tile
    # wg/wu: (H, tf)      gate/up slices of expert e, ffn tile f
    # wd:    (tf, H)      down slice
    # rw:    (tm, E)      lane-dense routing weights, resident
    # out:   (tm, H)      written once at the last (e, f) step
    # acc:   (tm, H) f32  scratch accumulator; w_sc: (tm, 1) f32 per-expert weight
    i = pl.program_id(0)
    e = pl.program_id(1)
    f = pl.program_id(2)

    @pl.when(jnp.logical_and(e == 0, f == 0))
    def _():
        acc_ref[...] = jnp.zeros_like(acc_ref)

    @pl.when(flags_ref[i, e] != 0)
    def _():
        # Per-(tile, expert) routing weight: hoisted out of the f loop.
        @pl.when(f == 0)
        def _():
            rw = rw_ref[...].astype(jnp.float32)
            lane = jax.lax.broadcasted_iota(jnp.int32, rw.shape, 1)
            w_sc[...] = jnp.sum(jnp.where(lane == e, rw, 0.0), axis=1,
                                keepdims=True)

        x = x_ref[...]
        gate = jnp.dot(x, wg_ref[...], preferred_element_type=jnp.float32)
        up = jnp.dot(x, wu_ref[...], preferred_element_type=jnp.float32)
        act = jax.nn.silu(gate) * up                      # (tm, tf) f32
        act = act * w_sc[...]                             # scale BEFORE down proj
        acc_ref[...] += jnp.dot(
            act.astype(wd_ref.dtype), wd_ref[...],
            preferred_element_type=jnp.float32)           # (tm, H) f32

    @pl.when(jnp.logical_and(e == pl.num_programs(1) - 1,
                             f == pl.num_programs(2) - 1))
    def _():
        out_ref[...] = acc_ref[...].astype(out_ref.dtype)


def moe_experts_pallas(flags, x, w_gate, w_up, w_down, routing_dense, *,
                       tm, tf_target, vmem_limit_bytes, out_dtype):
    # flags:         (n_t, E) int32
    # x:             (T, H)   (T already padded to a multiple of tm)
    # w_gate, w_up:  (E, H, F)
    # w_down:        (E, F, H)
    # routing_dense: (T, E)  lane-dense, 0 for non-selected experts
    T, H = x.shape
    E, _, F = w_gate.shape

    tf = _pick_tile(F, tf_target, 256)        # prefer 256 (v6e/v7x MXU width)
    if F > tf_target and tf == F:
        tf = _pick_tile(F, tf_target, 128)    # fall back to 128 alignment
    n_t, n_f = T // tm, F // tf

    w_bytes = jnp.dtype(w_gate.dtype).itemsize
    x_bytes = jnp.dtype(x.dtype).itemsize
    out_bytes = jnp.dtype(out_dtype).itemsize
    cost = pl.CostEstimate(
        flops=6 * T * H * F * E,
        transcendentals=T * F * E,
        bytes_accessed=(3 * E * H * F * w_bytes * n_t     # weights re-streamed per tile
                        + T * H * (x_bytes + out_bytes)   # x in + out
                        + T * E * x_bytes),               # routing table
    )

    return pl.pallas_call(
        _moe_kernel,
        out_shape=jax.ShapeDtypeStruct((T, H), out_dtype),
        grid_spec=pltpu.PrefetchScalarGridSpec(
            num_scalar_prefetch=1,
            grid=(n_t, E, n_f),
            in_specs=[
                pl.BlockSpec((tm, H), lambda i, e, f, flg: (i, 0)),          # x
                pl.BlockSpec((None, H, tf), lambda i, e, f, flg: (e, 0, f)), # gate
                pl.BlockSpec((None, H, tf), lambda i, e, f, flg: (e, 0, f)), # up
                pl.BlockSpec((None, tf, H), lambda i, e, f, flg: (e, f, 0)), # down
                pl.BlockSpec((tm, E), lambda i, e, f, flg: (i, 0)),          # routing
            ],
            out_specs=pl.BlockSpec((tm, H), lambda i, e, f, flg: (i, 0)),
            scratch_shapes=[pltpu.VMEM((tm, H), jnp.float32),   # f32 accumulator
                            pltpu.VMEM((tm, 1), jnp.float32)],  # per-expert weight
        ),
        compiler_params=pltpu.CompilerParams(
            dimension_semantics=("parallel", "arbitrary", "arbitrary"),
            vmem_limit_bytes=vmem_limit_bytes,
        ),
        cost_estimate=cost,
    )(flags, x, w_gate, w_up, w_down, routing_dense)


# ------------------------------- full forward ------------------------------ #
@functools.partial(jax.jit, static_argnames=("top_k", "compute_dtype"))
def jamba_sparse_moe_block(hidden_states, params, top_k, compute_dtype=None):
    B, S, H = hidden_states.shape
    x = hidden_states.reshape(-1, H)                        # (T, H)
    T = x.shape[0]
    E = params["w_router_t"].shape[1]
    out_dtype = hidden_states.dtype

    # --- generation-aware tiling -------------------------------------------
    tm_target, tf_target, vmem_limit = _device_tile_defaults()
    cdt = compute_dtype if compute_dtype is not None else x.dtype
    if jnp.dtype(cdt).itemsize >= 4:
        # Defaults are budgeted for bf16 streaming; halve for f32 compute.
        tm_target = max(16, tm_target // 2)
        tf_target = max(128, tf_target // 2)
    tm = min(tm_target, _round_up(T, 16))                   # 16-aligned token tile
    Tp = _round_up(T, tm)
    n_t = Tp // tm

    x_pad = jnp.pad(x, ((0, Tp - T), (0, 0))) if Tp != T else x

    # --- router (tiled Pallas matmul, f32 logits) ---------------------------
    tm_r = 256 if tm % 256 == 0 else tm                     # divides Tp by construction
    router_logits_f32 = router_logits_pallas(x_pad, params["w_router_t"], tm_r)[:T]

    # --- softmax + top-k + lane-dense routing table (one-hot, no scatter) ---
    routing_weights = jax.nn.softmax(router_logits_f32, axis=-1)
    topk_w, topk_idx = jax.lax.top_k(routing_weights, top_k)
    topk_w = topk_w.astype(out_dtype)                       # matches reference cast
    one_hot = jax.nn.one_hot(topk_idx, E, dtype=out_dtype)  # (T, top_k, E)
    routing_dense = jnp.sum(one_hot * topk_w[..., None], axis=1)  # (T, E)
    routing_dense = (jnp.pad(routing_dense, ((0, Tp - T), (0, 0)))
                     if Tp != T else routing_dense)

    # Per-(token-tile, expert) "has routed tokens" flags for compute skipping.
    flags = jnp.any(routing_dense.reshape(n_t, tm, E) != 0, axis=1).astype(jnp.int32)

    # --- optional low-precision compute path (f32 accumulation in-kernel) ---
    if compute_dtype is not None and jnp.dtype(compute_dtype) != x_pad.dtype:
        x_c = x_pad.astype(compute_dtype)
        wg = params["w_gate"].astype(compute_dtype)
        wu = params["w_up"].astype(compute_dtype)
        wd = params["w_down"].astype(compute_dtype)
        rw = routing_dense.astype(compute_dtype)
    else:
        x_c, wg, wu, wd, rw = (x_pad, params["w_gate"], params["w_up"],
                               params["w_down"], routing_dense)

    final = moe_experts_pallas(
        flags, x_c, wg, wu, wd, rw,
        tm=tm, tf_target=tf_target, vmem_limit_bytes=vmem_limit,
        out_dtype=out_dtype,
    )[:T]

    return final.reshape(B, S, H), router_logits_f32.astype(out_dtype)


# --------------------------- deterministic params --------------------------- #
def init_params(key, hidden, ffn, num_experts, dtype=jnp.float32):
    ks = jax.random.split(key, 4)

    def u(k, shape, fan_in):
        b = 1.0 / jnp.sqrt(fan_in)
        return jax.random.uniform(k, shape, dtype, minval=-b, maxval=b)

    return {
        "w_router_t": u(ks[0], (hidden, num_experts), hidden),    # (H, E)
        "w_gate": u(ks[1], (num_experts, hidden, ffn), hidden),   # (E, H, F)
        "w_up": u(ks[2], (num_experts, hidden, ffn), hidden),     # (E, H, F)
        "w_down": u(ks[3], (num_experts, ffn, hidden), ffn),      # (E, F, H)
    }


# --------------------------- pure-JAX reference ----------------------------- #
def reference_forward(hidden_states, params, top_k):
    B, S, H = hidden_states.shape
    x = hidden_states.reshape(-1, H)
    hp = jax.lax.Precision.HIGHEST
    logits = jnp.dot(x, params["w_router_t"], precision=hp)
    rw = jax.nn.softmax(logits.astype(jnp.float32), axis=-1)
    topk_w, topk_idx = jax.lax.top_k(rw, top_k)
    topk_w = topk_w.astype(x.dtype)
    E = params["w_router_t"].shape[1]
    out = jnp.zeros_like(x)
    for e in range(E):
        g = (jax.nn.silu(jnp.dot(x, params["w_gate"][e], precision=hp))
             * jnp.dot(x, params["w_up"][e], precision=hp))
        y = jnp.dot(g, params["w_down"][e], precision=hp)
        w_e = jnp.sum(jnp.where(topk_idx == e, topk_w, 0.0), axis=-1, keepdims=True)
        out = out + y * w_e
    return out.reshape(B, S, H), logits


if __name__ == "__main__":
    batch, seq, hidden, ffn = 2, 8, 32, 64
    num_experts, top_k = 4, 2

    key = jax.random.PRNGKey(0)
    k_params, k_x = jax.random.split(key)
    params = init_params(k_params, hidden, ffn, num_experts)
    hidden_states = jax.random.normal(k_x, (batch, seq, hidden), dtype=jnp.float32)

    # f32 path (exact semantics of the PyTorch module).
    out, logits = jamba_sparse_moe_block(hidden_states, params, top_k)
    jax.block_until_ready((out, logits))

    ref_out, ref_logits = reference_forward(hidden_states, params, top_k)
    assert out.shape == (batch, seq, hidden)
    assert logits.shape == (batch * seq, num_experts)
    assert jnp.allclose(out, ref_out, atol=2e-3, rtol=2e-3)
    assert jnp.allclose(logits, ref_logits, atol=2e-3, rtol=2e-3)

    # bf16 compute path (perf configuration from review): same kernels, bf16
    # streaming with f32 accumulation; loose tolerance check.
    out_bf16, _ = jamba_sparse_moe_block(hidden_states, params, top_k,
                                         compute_dtype=jnp.bfloat16)
    jax.block_until_ready(out_bf16)
    assert jnp.allclose(out_bf16, ref_out, atol=1e-1, rtol=1e-1)

    print("KERNEL_OK")
</pallas_src>

<mosaic_0001>
module attributes {stable_mosaic.version = 11 : i64} {
  func.func @_router_kernel(%arg0: i32, %arg1: memref<16x32xf32, #tpu.memory_space<vmem>>, %arg2: memref<32x4xf32, #tpu.memory_space<vmem>>, %arg3: memref<16x4xf32, #tpu.memory_space<vmem>>) attributes {dimension_semantics = [#tpu.dimension_semantics<parallel>], iteration_bounds = array<i64: 1>, scalar_prefetch = 0 : i64, scratch_operands = 0 : i64, tpu.core_type = #tpu.core_type<tc>, window_params = [{transform_indices = @transform_0, window_bounds = array<i64: 16, 32>}, {pipeline_mode = #tpu.pipeline_mode<synchronous>, transform_indices = @transform_1, window_bounds = array<i64: 32, 4>}, {transform_indices = @transform_2, window_bounds = array<i64: 16, 4>}]} {
    %c0 = arith.constant 0 : index
    %c0_0 = arith.constant 0 : index
    %0 = vector.load %arg1[%c0, %c0_0] : memref<16x32xf32, #tpu.memory_space<vmem>>, vector<16x32xf32>
    %c0_1 = arith.constant 0 : index
    %c0_2 = arith.constant 0 : index
    %1 = vector.load %arg2[%c0_1, %c0_2] : memref<32x4xf32, #tpu.memory_space<vmem>>, vector<32x4xf32>
    %cst = arith.constant dense<0.000000e+00> : vector<16x4xf32>
    %2 = tpu.matmul %0, %1, %cst {dimension_numbers = #tpu.dot_dimension_numbers<[1], [0], [0], [1], [0, 0, 1, 1], [], []>} : vector<16x32xf32>, vector<32x4xf32>, vector<16x4xf32> -> vector<16x4xf32>
    %c0_3 = arith.constant 0 : index
    %c0_4 = arith.constant 0 : index
    %3 = vector.load %arg3[%c0_3, %c0_4] : memref<16x4xf32, #tpu.memory_space<vmem>>, vector<16x4xf32>
    tpu.vector_store %arg3[%c0_3, %c0_4], %2 {strides = array<i32>} : memref<16x4xf32, #tpu.memory_space<vmem>>, vector<16x4xf32>,
    return
  }
  func.func @transform_0(%arg0: i32) -> (i32, i32) {
    %c0_i32 = arith.constant 0 : i32
    %c0_i32_0 = arith.constant 0 : i32
    return %arg0, %c0_i32 : i32, i32
  }
  func.func @transform_1(%arg0: i32) -> (i32, i32) {
    %c0_i32 = arith.constant 0 : i32
    %c0_i32_0 = arith.constant 0 : i32
    %c0_i32_1 = arith.constant 0 : i32
    return %c0_i32, %c0_i32_0 : i32, i32
  }
  func.func @transform_2(%arg0: i32) -> (i32, i32) {
    %c0_i32 = arith.constant 0 : i32
    %c0_i32_0 = arith.constant 0 : i32
    return %arg0, %c0_i32 : i32, i32
  }
}

module attributes {stable_mosaic.version = 11 : i64} {
  func.func @_moe_kernel(%arg0: i32, %arg1: i32, %arg2: i32, %arg3: memref<1x4xi32, #tpu.memory_space<smem>>, %arg4: memref<16x32xf32, #tpu.memory_space<vmem>>, %arg5: memref<1x32x64xf32, #tpu.memory_space<vmem>>, %arg6: memref<1x32x64xf32, #tpu.memory_space<vmem>>, %arg7: memref<1x64x32xf32, #tpu.memory_space<vmem>>, %arg8: memref<16x4xf32, #tpu.memory_space<vmem>>, %arg9: memref<16x32xf32, #tpu.memory_space<vmem>>, %arg10: memref<16x32xf32, #tpu.memory_space<vmem>>, %arg11: memref<16x1xf32, #tpu.memory_space<vmem>>) attributes {dimension_semantics = [#tpu.dimension_semantics<parallel>, #tpu.dimension_semantics<arbitrary>, #tpu.dimension_semantics<arbitrary>], iteration_bounds = array<i64: 1, 4, 1>, scalar_prefetch = 1 : i64, scratch_operands = 2 : i64, tpu.core_type = #tpu.core_type<tc>, window_params = [{transform_indices = @transform_0, window_bounds = array<i64: 16, 32>}, {transform_indices = @transform_1, window_bounds = array<i64: 1, 32, 64>}, {transform_indices = @transform_2, window_bounds = array<i64: 1, 32, 64>}, {transform_indices = @transform_3, window_bounds = array<i64: 1, 64, 32>}, {transform_indices = @transform_4, window_bounds = array<i64: 16, 4>}, {transform_indices = @transform_5, window_bounds = array<i64: 16, 32>}]} {
    %c0_i32 = arith.constant 0 : i32
    %0 = arith.cmpi eq, %arg1, %c0_i32 : i32
    %c0_i32_0 = arith.constant 0 : i32
    %1 = arith.cmpi eq, %arg2, %c0_i32_0 : i32
    %2 = arith.andi %0, %1 : i1
    %3 = arith.extui %2 : i1 to i32
    %c0_i32_1 = arith.constant 0 : i32
    %4 = arith.cmpi ne, %3, %c0_i32_1 : i32
    scf.if %4 {
      %cst = arith.constant 0.000000e+00 : f32
      %16 = vector.broadcast %cst : f32 to vector<16x32xf32>
      %c0 = arith.constant 0 : index
      %c0_6 = arith.constant 0 : index
      %17 = vector.load %arg10[%c0, %c0_6] : memref<16x32xf32, #tpu.memory_space<vmem>>, vector<16x32xf32>
      tpu.vector_store %arg10[%c0, %c0_6], %16 {strides = array<i32>} : memref<16x32xf32, #tpu.memory_space<vmem>>, vector<16x32xf32>,
    } else {
    }
    %5 = arith.index_cast %arg0 : i32 to index
    %6 = arith.index_cast %arg1 : i32 to index
    %7 = memref.load %arg3[%5, %6] : memref<1x4xi32, #tpu.memory_space<smem>>
    %c0_i32_2 = arith.constant 0 : i32
    %8 = arith.cmpi ne, %7, %c0_i32_2 : i32
    %9 = arith.extui %8 : i1 to i32
    %c0_i32_3 = arith.constant 0 : i32
    %10 = arith.cmpi ne, %9, %c0_i32_3 : i32
    scf.if %10 {
      %c0_i32_6 = arith.constant 0 : i32
      %16 = arith.cmpi eq, %arg2, %c0_i32_6 : i32
      %17 = arith.extui %16 : i1 to i32
      %c0_i32_7 = arith.constant 0 : i32
      %18 = arith.cmpi ne, %17, %c0_i32_7 : i32
      scf.if %18 {
        %c0_27 = arith.constant 0 : index
        %c0_28 = arith.constant 0 : index
        %42 = vector.load %arg8[%c0_27, %c0_28] : memref<16x4xf32, #tpu.memory_space<vmem>>, vector<16x4xf32>
        %43 = tpu.iota {dimensions = array<i32: 1>} : vector<16x4xi32>
        %44 = vector.broadcast %arg1 : i32 to vector<16x4xi32>
        %45 = arith.cmpi eq, %43, %44 : vector<16x4xi32>
        %cst_29 = arith.constant 0.000000e+00 : f32
        %46 = vector.broadcast %cst_29 : f32 to vector<16x4xf32>
        %47 = arith.select %45, %42, %46 : vector<16x4xi1>, vector<16x4xf32>
        %cst_30 = arith.constant dense<0.000000e+00> : vector<16xf32>
        %48 = vector.multi_reduction <add>, %47, %cst_30 [1] : vector<16x4xf32> to vector<16xf32>
        %49 = vector.shape_cast %48 : vector<16xf32> to vector<16x1xf32>
        %c0_31 = arith.constant 0 : index
        %c0_32 = arith.constant 0 : index
        %50 = vector.load %arg11[%c0_31, %c0_32] : memref<16x1xf32, #tpu.memory_space<vmem>>, vector<16x1xf32>
        tpu.vector_store %arg11[%c0_31, %c0_32], %49 {strides = array<i32>} : memref<16x1xf32, #tpu.memory_space<vmem>>, vector<16x1xf32>,
      } else {
      }
      %c0 = arith.constant 0 : index
      %c0_8 = arith.constant 0 : index
      %19 = vector.load %arg4[%c0, %c0_8] : memref<16x32xf32, #tpu.memory_space<vmem>>, vector<16x32xf32>
      %c0_9 = arith.constant 0 : index
      %c0_10 = arith.constant 0 : index
      %c0_11 = arith.constant 0 : index
      %20 = vector.load %arg5[%c0_9, %c0_10, %c0_11] : memref<1x32x64xf32, #tpu.memory_space<vmem>>, vector<1x32x64xf32>
      %21 = vector.shape_cast %20 : vector<1x32x64xf32> to vector<32x64xf32>
      %cst = arith.constant dense<0.000000e+00> : vector<16x64xf32>
      %22 = tpu.matmul %19, %21, %cst {dimension_numbers = #tpu.dot_dimension_numbers<[1], [0], [0], [1], [0, 0, 1, 1], [], []>} : vector<16x32xf32>, vector<32x64xf32>, vector<16x64xf32> -> vector<16x64xf32>
      %c0_12 = arith.constant 0 : index
      %c0_13 = arith.constant 0 : index
      %c0_14 = arith.constant 0 : index
      %23 = vector.load %arg6[%c0_12, %c0_13, %c0_14] : memref<1x32x64xf32, #tpu.memory_space<vmem>>, vector<1x32x64xf32>
      %24 = vector.shape_cast %23 : vector<1x32x64xf32> to vector<32x64xf32>
      %cst_15 = arith.constant dense<0.000000e+00> : vector<16x64xf32>
      %25 = tpu.matmul %19, %24, %cst_15 {dimension_numbers = #tpu.dot_dimension_numbers<[1], [0], [0], [1], [0, 0, 1, 1], [], []>} : vector<16x32xf32>, vector<32x64xf32>, vector<16x64xf32> -> vector<16x64xf32>
      %26 = arith.negf %22 : vector<16x64xf32>
      %27 = math.exp %26 : vector<16x64xf32>
      %cst_16 = arith.constant 1.000000e+00 : f32
      %28 = vector.broadcast %cst_16 : f32 to vector<16x64xf32>
      %29 = arith.addf %28, %27 : vector<16x64xf32>
      %30 = arith.divf %28, %29 : vector<16x64xf32>
      %31 = arith.mulf %22, %30 : vector<16x64xf32>
      %32 = arith.mulf %31, %25 : vector<16x64xf32>
      %c0_17 = arith.constant 0 : index
      %c0_18 = arith.constant 0 : index
      %33 = vector.load %arg11[%c0_17, %c0_18] : memref<16x1xf32, #tpu.memory_space<vmem>>, vector<16x1xf32>
      %34 = vector.broadcast %33 : vector<16x1xf32> to vector<16x64xf32>
      %35 = arith.mulf %32, %34 : vector<16x64xf32>
      %c0_19 = arith.constant 0 : index
      %c0_20 = arith.constant 0 : index
      %36 = vector.load %arg10[%c0_19, %c0_20] : memref<16x32xf32, #tpu.memory_space<vmem>>, vector<16x32xf32>
      %c0_21 = arith.constant 0 : index
      %c0_22 = arith.constant 0 : index
      %c0_23 = arith.constant 0 : index
      %37 = vector.load %arg7[%c0_21, %c0_22, %c0_23] : memref<1x64x32xf32, #tpu.memory_space<vmem>>, vector<1x64x32xf32>
      %38 = vector.shape_cast %37 : vector<1x64x32xf32> to vector<64x32xf32>
      %cst_24 = arith.constant dense<0.000000e+00> : vector<16x32xf32>
      %39 = tpu.matmul %35, %38, %cst_24 {dimension_numbers = #tpu.dot_dimension_numbers<[1], [0], [0], [1], [0, 0, 1, 1], [], []>} : vector<16x64xf32>, vector<64x32xf32>, vector<16x32xf32> -> vector<16x32xf32>
      %40 = arith.addf %36, %39 : vector<16x32xf32>
      %c0_25 = arith.constant 0 : index
      %c0_26 = arith.constant 0 : index
      %41 = vector.load %arg10[%c0_25, %c0_26] : memref<16x32xf32, #tpu.memory_space<vmem>>, vector<16x32xf32>
      tpu.vector_store %arg10[%c0_25, %c0_26], %40 {strides = array<i32>} : memref<16x32xf32, #tpu.memory_space<vmem>>, vector<16x32xf32>,
    } else {
    }
    %c3_i32 = arith.constant 3 : i32
    %11 = arith.cmpi eq, %arg1, %c3_i32 : i32
    %c0_i32_4 = arith.constant 0 : i32
    %12 = arith.cmpi eq, %arg2, %c0_i32_4 : i32
    %13 = arith.andi %11, %12 : i1
    %14 = arith.extui %13 : i1 to i32
    %c0_i32_5 = arith.constant 0 : i32
    %15 = arith.cmpi ne, %14, %c0_i32_5 : i32
    scf.if %15 {
      %c0 = arith.constant 0 : index
      %c0_6 = arith.constant 0 : index
      %16 = vector.load %arg10[%c0, %c0_6] : memref<16x32xf32, #tpu.memory_space<vmem>>, vector<16x32xf32>
      %c0_7 = arith.constant 0 : index
      %c0_8 = arith.constant 0 : index
      %17 = vector.load %arg9[%c0_7, %c0_8] : memref<16x32xf32, #tpu.memory_space<vmem>>, vector<16x32xf32>
      tpu.vector_store %arg9[%c0_7, %c0_8], %16 {strides = array<i32>} : memref<16x32xf32, #tpu.memory_space<vmem>>, vector<16x32xf32>,
    } else {
    }
    return
  }
  func.func @transform_0(%arg0: i32, %arg1: i32, %arg2: i32, %arg3: memref<1x4xi32, #tpu.memory_space<smem>>) -> (i32, i32) {
    %c0_i32 = arith.constant 0 : i32
    %c0_i32_0 = arith.constant 0 : i32
    return %arg0, %c0_i32 : i32, i32
  }
  func.func @transform_1(%arg0: i32, %arg1: i32, %arg2: i32, %arg3: memref<1x4xi32, #tpu.memory_space<smem>>) -> (i32, i32, i32) {
    %c0_i32 = arith.constant 0 : i32
    %c0_i32_0 = arith.constant 0 : i32
    return %arg1, %c0_i32, %arg2 : i32, i32, i32
  }
  func.func @transform_2(%arg0: i32, %arg1: i32, %arg2: i32, %arg3: memref<1x4xi32, #tpu.memory_space<smem>>) -> (i32, i32, i32) {
    %c0_i32 = arith.constant 0 : i32
    %c0_i32_0 = arith.constant 0 : i32
    return %arg1, %c0_i32, %arg2 : i32, i32, i32
  }
  func.func @transform_3(%arg0: i32, %arg1: i32, %arg2: i32, %arg3: memref<1x4xi32, #tpu.memory_space<smem>>) -> (i32, i32, i32) {
    %c0_i32 = arith.constant 0 : i32
    %c0_i32_0 = arith.constant 0 : i32
    return %arg1, %arg2, %c0_i32 : i32, i32, i32
  }
  func.func @transform_4(%arg0: i32, %arg1: i32, %arg2: i32, %arg3: memref<1x4xi32, #tpu.memory_space<smem>>) -> (i32, i32) {
    %c0_i32 = arith.constant 0 : i32
    %c0_i32_0 = arith.constant 0 : i32
    return %arg0, %c0_i32 : i32, i32
  }
  func.func @transform_5(%arg0: i32, %arg1: i32, %arg2: i32, %arg3: memref<1x4xi32, #tpu.memory_space<smem>>) -> (i32, i32) {
    %c0_i32 = arith.constant 0 : i32
    %c0_i32_0 = arith.constant 0 : i32
    return %arg0, %c0_i32 : i32, i32
  }
}

</mosaic_0001>

<llo_original>
// kernel: jamba_sparse_moe_block.2
$region0: #{jamba_sparse_moe_block.2}
  #allocation0 [shape = 'u32[]', space=smem, size = 0x4, offset = 0x4, fixed_abs, tag = 'smem constant byte address 0x4 - core index']
  #allocation1 [shape = 'u32[144,128]{1,0:T(1,128)}', space=vmem, size = 0x12000, scoped, tag = 'internal scratch']
  %s0 = inlined_call_operand.vmem [shape: f32[16,32], index: 0, kind: input, shape index: {}]
  %s1 = inlined_call_operand.vmem [shape: f32[32,4], index: 1, kind: input, shape index: {}]
  %s2 = inlined_call_operand.vmem [shape: f32[16,4], index: 2, kind: output, shape index: {}]
  %s3 = sld [smem:[#allocation0]]
  $region18: #{jamba_sparse_moe_block.2} parent=0
    _
  %s5 = ssub.s32 1, %s3
  %s6 = scalar_select 0, %s5, %s3
  // Predicated region
  $region2: #{jamba_sparse_moe_block.2} parent=0 // pred_check
    _
  $region3: #{jamba_sparse_moe_block.2} parent=0 // pred_check_branch
    %8 = sbr.rel (0) target = $region5
  $region4: #{jamba_sparse_moe_block.2} parent=0 // pred_region
    _
  $region5: #{jamba_sparse_moe_block.2} parent=0 // pred_fallthru
    _
  // Predicated region
  $region6: #{jamba_sparse_moe_block.2} parent=0 // pred_check
    _
  $region7: #{jamba_sparse_moe_block.2} parent=0 // pred_check_branch
    %10 = sbr.rel (0) target = $region9
  $region8: #{jamba_sparse_moe_block.2} parent=0 // pred_region
    _
  $region9: #{jamba_sparse_moe_block.2} parent=0 // pred_fallthru
    _
  %v11 = vld [vmem:[%s0] sm:$0xff]
  %v12 = vld [vmem:[%s0 + $0x8] sm:$0xff]
  %v13 = vld [vmem:[%s1] sm:$0xff]
  %v14 = vld [vmem:[%s1 + $0x8] sm:$0xff]
  %v15 = vld [vmem:[%s1 + $0x10] sm:$0xff]
  %v16 = vld [vmem:[%s1 + $0x18] sm:$0xff]
  %vm17 = vcmask 261120
  %v19 = vsel %vm17, %v11, 0
  %v22 = vsel %vm17, %v12, 0
  %24 = vmatprep.subr.mxu0 0.0
  %25 = vmatpush1.msra.mxu0 %v13
  %26 = vmatprep.subr.mxu0 0.0
  %27 = vmatpush1.msra.mxu0 %v14
  %28 = vmatprep.subr.mxu0 0.0
  %29 = vmatpush1.msra.mxu0 %v15
  %30 = vmatprep.subr.mxu0 0.0
  %31 = vmatpush1.msra.mxu0 %v16
  %32 = vmatprep.subr.mxu0 0.0
  %33 = vmatpush1.msra.mxu0 0.0
  %34 = vmatprep.subr.mxu0 0.0
  %35 = vmatpush1.msra.mxu0 0.0
  %36 = vmatprep.subr.mxu0 0.0
  %37 = vmatpush1.msra.mxu0 0.0
  %38 = vmatprep.subr.mxu0 0.0
  %39 = vmatpush1.msra.mxu0 0.0
  %40 = vmatprep.subr.mxu0 0.0
  %41 = vmatpush1.msra.mxu0 0.0
  %42 = vmatprep.subr.mxu0 0.0
  %43 = vmatpush1.msra.mxu0 0.0
  %44 = vmatprep.subr.mxu0 0.0
  %45 = vmatpush1.msra.mxu0 0.0
  %46 = vmatprep.subr.mxu0 0.0
  %47 = vmatpush1.msra.mxu0 0.0
  %48 = vmatprep.subr.mxu0 0.0
  %49 = vmatpush1.msra.mxu0 0.0
  %50 = vmatprep.subr.mxu0 0.0
  %51 = vmatpush1.msra.mxu0 0.0
  %52 = vmatprep.subr.mxu0 0.0
  %53 = vmatpush1.msra.mxu0 0.0
  %54 = vmatprep.subr.mxu0 0.0
  %55 = vmatpush1.msra.mxu0 0.0
  %56 = vmatprep.subr.mxu0 0.0
  %57 = vmatpush1.msra.mxu0 0.0
  %58 = vmatprep.subr.mxu0 0.0
  %59 = vmatpush1.msra.mxu0 0.0
  %60 = vmatprep.subr.mxu0 0.0
  %61 = vmatpush1.msra.mxu0 0.0
  %62 = vmatprep.subr.mxu0 0.0
  %63 = vmatpush1.msra.mxu0 0.0
  %64 = vmatprep.subr.mxu0 0.0
  %65 = vmatpush1.msra.mxu0 0.0
  %66 = vmatprep.subr.mxu0 0.0
  %67 = vmatpush1.msra.mxu0 0.0
  %68 = vmatprep.subr.mxu0 0.0
  %69 = vmatpush1.msra.mxu0 0.0
  %70 = vmatprep.subr.mxu0 0.0
  %71 = vmatpush1.msra.mxu0 0.0
  %72 = vmatprep.subr.mxu0 0.0
  %73 = vmatpush1.msra.mxu0 0.0
  %74 = vmatprep.subr.mxu0 0.0
  %75 = vmatpush1.msra.mxu0 0.0
  %76 = vmatprep.subr.mxu0 0.0
  %77 = vmatpush1.msra.mxu0 0.0
  %78 = vmatprep.subr.mxu0 0.0
  %79 = vmatpush1.msra.mxu0 0.0
  %80 = vmatprep.subr.mxu0 0.0
  %81 = vmatpush1.msra.mxu0 0.0
  %82 = vmatprep.subr.mxu0 0.0
  %83 = vmatpush1.msra.mxu0 0.0
  %84 = vmatprep.subr.mxu0 0.0
  %85 = vmatpush1.msra.mxu0 0.0
  %86 = vmatprep.subr.mxu0 0.0
  %87 = vmatpush1.msra.mxu0 0.0
  %88 = vmatprep.mubr.f32.mxu0 0.0
  %89 = vmatmul.mubr.f32.gmra.mrb[0].mxu0 %v19
  %v90 = vpop.f32.mrb[0].mxu0
  %v91 = vadd.f32 0.0, %v90
  %v92 = vpop.f32.mrb[0].mxu0
  %93 = vmatprep.mubr.f32.mxu0 0.0
  %94 = vmatmul.mubr.f32.gmra.mrb[0].mxu0 %v22
  %v95 = vpop.f32.mrb[0].mxu0
  %v96 = vadd.f32 0.0, %v95
  %v97 = vpop.f32.mrb[0].mxu0
  %98 = vdwg.mxu0
  %vm99 = vcmask 31744
  %100 = vst.msk [vmem:[%s2] sm:$0xff] %vm99, %v91
  %101 = vst.msk [vmem:[%s2 + $0x8] sm:$0xff] %vm99, %v96
  // Predicated region
  $region10: #{jamba_sparse_moe_block.2} parent=0 // pred_check
    _
  $region11: #{jamba_sparse_moe_block.2} parent=0 // pred_check_branch
    %103 = sbr.rel (0) target = $region13
  $region12: #{jamba_sparse_moe_block.2} parent=0 // pred_region
    _
  $region13: #{jamba_sparse_moe_block.2} parent=0 // pred_fallthru
    _
  // Predicated region
  $region14: #{jamba_sparse_moe_block.2} parent=0 // pred_check
    _
  $region15: #{jamba_sparse_moe_block.2} parent=0 // pred_check_branch
    %105 = sbr.rel (0) target = $region17
  $region16: #{jamba_sparse_moe_block.2} parent=0 // pred_region
    _
  $region17: #{jamba_sparse_moe_block.2} parent=0 // pred_fallthru
    _

// kernel: jamba_sparse_moe_block.3
$region0: #{jamba_sparse_moe_block.3}
  #allocation0 [shape = 'u32[]', space=smem, size = 0x4, offset = 0x4, fixed_abs, tag = 'smem constant byte address 0x4 - core index']
  #allocation1 [shape = 'u32[144,128]{1,0:T(1,128)}', space=vmem, size = 0x12000, scoped, tag = 'internal scratch']
  #allocation2 [shape = 'f32[16,32]{1,0:T(8,128)}', space=vmem, size = 0x2000, scoped, tag = 'scratch operand']
  #allocation3 [shape = 'f32[16,1]{1,0:T(8,128)}', space=vmem, size = 0x2000, scoped, tag = 'scratch operand']
  #allocation4 [shape = 's32[1]{0}', space=sflag, size = 0x4, scoped, tag = 'scoped memory for jamba_sparse_moe_block.3']
  #allocation5 [shape = 'u8[512]{0}', space=smem, size = 0x200, scoped, tag = 'prefetched SMEM operand 0']
  %s0 = inlined_call_operand.vmem [shape: s32[1,4], index: 0, kind: input, shape index: {}]
  %s1 = inlined_call_operand.vmem [shape: f32[16,32], index: 1, kind: input, shape index: {}]
  %s2 = inlined_call_operand.vmem [shape: f32[4,32,64], index: 2, kind: input, shape index: {}]
  %s3 = inlined_call_operand.vmem [shape: f32[4,32,64], index: 3, kind: input, shape index: {}]
  %s4 = inlined_call_operand.vmem [shape: f32[4,64,32], index: 4, kind: input, shape index: {}]
  %s5 = inlined_call_operand.vmem [shape: f32[16,4], index: 5, kind: input, shape index: {}]
  %s6 = inlined_call_operand.hbm [shape: f32[16,32], index: 6, kind: output, shape index: {}]
  %s7 = sld [smem:[#allocation0]]
  $region69: #{jamba_sparse_moe_block.3} parent=0
    _
  %s9 = ssub.s32 1, %s7
  %s10 = scalar_select 0, %s9, %s7
  %s11 = sshll.u32 %s0, 4
  %s12 = int_to_ptr.vmem [resolvable:$true] %s11
  %14 = dma.vmem_to_smem %s12, 16, [#allocation5], [#allocation4]
  %15 = dma.done [#allocation4], 16
  %16 = sfence
  $region1: #{jamba_sparse_moe_block.3} parent=0
    #allocation6 [shape = 'u8[8192]{0}', space=vmem, size = 0x2000, scoped, tag = 'output window, operand 0, single buffered']
    #allocation7 [shape = 's32[2]{0}', space=sflag, size = 0x8, scoped, tag = 'scoped memory for jamba_sparse_moe_block.3']
    %17 = vsyncpa [#allocation7], 0
    loop: start=0, step=1, limit=6
    $region2: #{jamba_sparse_moe_block.3} parent=1 // loop_pre_header
      _
    $region3: #{jamba_sparse_moe_block.3} parent=1 // loop_header
      %s19 = sphi 0, %s23
      %p20 = scmp.ge.s32.totalorder %s19, 6
      %s26 = sphi 0, %s45
      %s27 = sphi 0, %s41
      %s28 = sphi 0, %s37
      %s29 = sphi 0, %s26
      %s30 = sphi 0, %s27
      %s31 = sphi 0, %s28
      %s32 = sphi 0, %s29
      %s33 = sphi 0, %s30
      %s34 = sphi 0, %s31
      %s48 = sphi 0, %s50
      %s51 = sphi 0, %s48
      %s52 = sphi 0, %s51
      %s68 = sphi 0, %s52
      %s76 = sphi 0, %s78
      %s79 = sphi 0, %s76
      %s80 = sphi 0, %s79
      %s96 = sphi 0, %s80
      %s104 = sphi 0, %s106
      %s107 = sphi 0, %s104
      %s108 = sphi 0, %s107
      %s124 = sphi 0, %s108
      %s132 = sphi 0, %s134
      %s135 = sphi 0, %s132
      %s136 = sphi 0, %s135
      %s152 = sphi 0, %s136
      %s158 = sphi 0, %s160
      %s161 = sphi 0, %s158
      %s162 = sphi 0, %s161
      %s178 = sphi 0, %s162
      %s184 = sphi 0, %s186
      %s187 = sphi 0, %s184
      %s188 = sphi 0, %s187
      %s204 = sphi 0, %s188
    $region4: #{jamba_sparse_moe_block.3} parent=1 // loop_header_branch
      %22 = sbr.rel (%p20) target = $region8
    $region5: #{jamba_sparse_moe_block.3} parent=1 // loop_body
      %s24 = ssub.s32 %s19, 1
      %s25 = ssub.s32 %s19, 2
      %s35 = sadd.s32 1, %s28
      %p36 = scmp.ge.s32.totalorder %s35, 1
      %s37 = scalar_select %p36, 0, %s35
      %s38 = sadd.s32 1, %s27
      %s39 = scalar_select %p36, %s38, %s27
      %p40 = scmp.ge.s32.totalorder %s39, 4
      %s41 = scalar_select %p40, 0, %s39
      %s42 = sadd.s32 1, %s26
      %s43 = scalar_select %p40, %s42, %s26
      %p44 = scmp.ge.s32.totalorder %s43, 1
      %s45 = scalar_select %p44, 0, %s43
      %s46 = ssub.s32 %s26, %s45
      %p47 = scmp.eq.s32.totalorder %s46, 0
      %s49 = sadd.s32 %s48, 1
      %s50 = scalar_select %p47, %s48, %s49
      %p53 = pneg %p47
      %p54 = scmp.eq.s32.totalorder %s19, 3
      %p55 = por %p53, %p54
      %p56 = scmp.ne.s32.totalorder %s48, %s51
      %p57 = scmp.eq.s32.totalorder %s19, 0
      %p58 = por %p56, %p57
      %p59 = scmp.ne.s32.totalorder %s48, %s51
      %p60 = scmp.eq.s32.totalorder %s24, 3
      %p61 = por %p59, %p60
      %p62 = scmp.ne.s32.totalorder %s51, %s52
      %p63 = scmp.eq.s32.totalorder %s24, 0
      %p64 = por %p62, %p63
      %p65 = scmp.ne.s32.totalorder %s51, %s52
      %p66 = scmp.eq.s32.totalorder %s25, 3
      %p67 = por %p65, %p66
      %p69 = scmp.ne.s32.totalorder %s52, %s68
      %p70 = scmp.eq.s32.totalorder %s25, 0
      %p71 = por %p69, %p70
      %s72 = ssub.s32 %s27, %s41
      %s73 = ssub.s32 %s28, %s37
      %s74 = sor.u32 %s72, %s73
      %p75 = scmp.eq.s32.totalorder %s74, 0
      %s77 = sadd.s32 %s76, 1
      %s78 = scalar_select %p75, %s76, %s77
      %p81 = pneg %p75
      %p82 = scmp.eq.s32.totalorder %s19, 3
      %p83 = por %p81, %p82
      %p84 = scmp.ne.s32.totalorder %s76, %s79
      %p85 = scmp.eq.s32.totalorder %s19, 0
      %p86 = por %p84, %p85
      %p87 = scmp.ne.s32.totalorder %s76, %s79
      %p88 = scmp.eq.s32.totalorder %s24, 3
      %p89 = por %p87, %p88
      %p90 = scmp.ne.s32.totalorder %s79, %s80
      %p91 = scmp.eq.s32.totalorder %s24, 0
      %p92 = por %p90, %p91
      %p93 = scmp.ne.s32.totalorder %s79, %s80
      %p94 = scmp.eq.s32.totalorder %s25, 3
      %p95 = por %p93, %p94
      %p97 = scmp.ne.s32.totalorder %s80, %s96
      %p98 = scmp.eq.s32.totalorder %s25, 0
      %p99 = por %p97, %p98
      %s100 = ssub.s32 %s27, %s41
      %s101 = ssub.s32 %s28, %s37
      %s102 = sor.u32 %s100, %s101
      %p103 = scmp.eq.s32.totalorder %s102, 0
      %s105 = sadd.s32 %s104, 1
      %s106 = scalar_select %p103, %s104, %s105
      %p109 = pneg %p103
      %p110 = scmp.eq.s32.totalorder %s19, 3
      %p111 = por %p109, %p110
      %p112 = scmp.ne.s32.totalorder %s104, %s107
      %p113 = scmp.eq.s32.totalorder %s19, 0
      %p114 = por %p112, %p113
      %p115 = scmp.ne.s32.totalorder %s104, %s107
      %p116 = scmp.eq.s32.totalorder %s24, 3
      %p117 = por %p115, %p116
      %p118 = scmp.ne.s32.totalorder %s107, %s108
      %p119 = scmp.eq.s32.totalorder %s24, 0
      %p120 = por %p118, %p119
      %p121 = scmp.ne.s32.totalorder %s107, %s108
      %p122 = scmp.eq.s32.totalorder %s25, 3
      %p123 = por %p121, %p122
      %p125 = scmp.ne.s32.totalorder %s108, %s124
      %p126 = scmp.eq.s32.totalorder %s25, 0
      %p127 = por %p125, %p126
      %s128 = ssub.s32 %s27, %s41
      %s129 = ssub.s32 %s28, %s37
      %s130 = sor.u32 %s128, %s129
      %p131 = scmp.eq.s32.totalorder %s130, 0
      %s133 = sadd.s32 %s132, 1
      %s134 = scalar_select %p131, %s132, %s133
      %p137 = pneg %p131
      %p138 = scmp.eq.s32.totalorder %s19, 3
      %p139 = por %p137, %p138
      %p140 = scmp.ne.s32.totalorder %s132, %s135
      %p141 = scmp.eq.s32.totalorder %s19, 0
      %p142 = por %p140, %p141
      %p143 = scmp.ne.s32.totalorder %s132, %s135
      %p144 = scmp.eq.s32.totalorder %s24, 3
      %p145 = por %p143, %p144
      %p146 = scmp.ne.s32.totalorder %s135, %s136
      %p147 = scmp.eq.s32.totalorder %s24, 0
      %p148 = por %p146, %p147
      %p149 = scmp.ne.s32.totalorder %s135, %s136
      %p150 = scmp.eq.s32.totalorder %s25, 3
      %p151 = por %p149, %p150
      %p153 = scmp.ne.s32.totalorder %s136, %s152
      %p154 = scmp.eq.s32.totalorder %s25, 0
      %p155 = por %p153, %p154
      %s156 = ssub.s32 %s26, %s45
      %p157 = scmp.eq.s32.totalorder %s156, 0
      %s159 = sadd.s32 %s158, 1
      %s160 = scalar_select %p157, %s158, %s159
      %p163 = pneg %p157
      %p164 = scmp.eq.s32.totalorder %s19, 3
      %p165 = por %p163, %p164
      %p166 = scmp.ne.s32.totalorder %s158, %s161
      %p167 = scmp.eq.s32.totalorder %s19, 0
      %p168 = por %p166, %p167
      %p169 = scmp.ne.s32.totalorder %s158, %s161
      %p170 = scmp.eq.s32.totalorder %s24, 3
      %p171 = por %p169, %p170
      %p172 = scmp.ne.s32.totalorder %s161, %s162
      %p173 = scmp.eq.s32.totalorder %s24, 0
      %p174 = por %p172, %p173
      %p175 = scmp.ne.s32.totalorder %s161, %s162
      %p176 = scmp.eq.s32.totalorder %s25, 3
      %p177 = por %p175, %p176
      %p179 = scmp.ne.s32.totalorder %s162, %s178
      %p180 = scmp.eq.s32.totalorder %s25, 0
      %p181 = por %p179, %p180
      %s182 = ssub.s32 %s26, %s45
      %p183 = scmp.eq.s32.totalorder %s182, 0
      %s185 = sadd.s32 %s184, 1
      %s186 = scalar_select %p183, %s184, %s185
      %p189 = pneg %p183
      %p190 = scmp.eq.s32.totalorder %s19, 3
      %p191 = por %p189, %p190
      %p192 = scmp.ne.s32.totalorder %s184, %s187
      %p193 = scmp.eq.s32.totalorder %s19, 0
      %p194 = por %p192, %p193
      %p195 = scmp.ne.s32.totalorder %s184, %s187
      %p196 = scmp.eq.s32.totalorder %s24, 3
      %p197 = por %p195, %p196
      %p198 = scmp.ne.s32.totalorder %s187, %s188
      %p199 = scmp.eq.s32.totalorder %s24, 0
      %p200 = por %p198, %p199
      %p201 = scmp.ne.s32.totalorder %s187, %s188
      %p202 = scmp.eq.s32.totalorder %s25, 3
      %p203 = por %p201, %p202
      %p205 = scmp.ne.s32.totalorder %s188, %s204
      %p206 = scmp.eq.s32.totalorder %s25, 0
      %p207 = por %p205, %p206
      %p208 = scmp.le.s32.totalorder 1, %s19
      %p209 = scmp.lt.s32.totalorder %s19, 5
      %p210 = pnand %p208, %p209
      %p211 = pneg %p210
      // Predicated region
      $region9: #{jamba_sparse_moe_block.3} parent=5 // pred_check
        _
      $region10: #{jamba_sparse_moe_block.3} parent=5 // pred_check_branch
        %213 = sbr.rel (%p210) target = $region12
      $region11: #{jamba_sparse_moe_block.3} parent=5 // pred_region
        %s214 = ssub.s32 %s19, 1
        // Predicated region
        $region13: #{jamba_sparse_moe_block.3} parent=11 // pred_check
          %p215 = pneg %p64
        $region14: #{jamba_sparse_moe_block.3} parent=11 // pred_check_branch
          %217 = sbr.rel (%p215) target = $region16
        $region15: #{jamba_sparse_moe_block.3} parent=11 // pred_region
          %s218 = smul.u32 2, %s29
          %p219 = scmp.lt.s32.totalorder %s218, 1
          %s220 = scalar_select %p219, %s218, 1
          %s221 = smul.addr %s220, 8
          %s222 = scalar_lea.vmem %s1, %s221
          %s223 = smul.u32 2, %s29
        $region16: #{jamba_sparse_moe_block.3} parent=11 // pred_fallthru
          _
        // Predicated region
        $region17: #{jamba_sparse_moe_block.3} parent=11 // pred_check
          %p224 = pneg %p174
        $region18: #{jamba_sparse_moe_block.3} parent=11 // pred_check_branch
          %226 = sbr.rel (%p224) target = $region20
        $region19: #{jamba_sparse_moe_block.3} parent=11 // pred_region
          %s227 = smul.u32 2, %s29
          %p228 = scmp.lt.s32.totalorder %s227, 1
          %s229 = scalar_select %p228, %s227, 1
          %s230 = smul.addr %s229, 8
          %s231 = scalar_lea.vmem %s5, %s230
          %s232 = smul.u32 2, %s29
        $region20: #{jamba_sparse_moe_block.3} parent=11 // pred_fallthru
          _
      $region12: #{jamba_sparse_moe_block.3} parent=5 // pred_fallthru
        _
      %p233 = scmp.lt.s32.totalorder %s19, 4
      // Predicated region
      $region21: #{jamba_sparse_moe_block.3} parent=5 // pred_check
        %p234 = pneg %p233
      $region22: #{jamba_sparse_moe_block.3} parent=5 // pred_check_branch
        %236 = sbr.rel (%p234) target = $region24
      $region23: #{jamba_sparse_moe_block.3} parent=5 // pred_region
        // Predicated region
        $region25: #{jamba_sparse_moe_block.3} parent=23 // pred_check
          %p237 = pneg %p86
        $region26: #{jamba_sparse_moe_block.3} parent=23 // pred_check_branch
          %239 = sbr.rel (%p237) target = $region28
        $region27: #{jamba_sparse_moe_block.3} parent=23 // pred_region
          %p240 = scmp.lt.s32.totalorder %s27, 3
          %s241 = scalar_select %p240, %s27, 3
          %p242 = scmp.lt.s32.totalorder %s28, 0
          %s243 = scalar_select %p242, %s28, 0
          %s244 = smul.addr %s241, 4
          %s245 = sadd.s32 %s243, %s244
          %s246 = smul.addr %s245, 8
          %s247 = scalar_lea.vmem %s2, %s246
        $region28: #{jamba_sparse_moe_block.3} parent=23 // pred_fallthru
          _
        // Predicated region
        $region29: #{jamba_sparse_moe_block.3} parent=23 // pred_check
          %p248 = pneg %p114
        $region30: #{jamba_sparse_moe_block.3} parent=23 // pred_check_branch
          %250 = sbr.rel (%p248) target = $region32
        $region31: #{jamba_sparse_moe_block.3} parent=23 // pred_region
          %p251 = scmp.lt.s32.totalorder %s27, 3
          %s252 = scalar_select %p251, %s27, 3
          %p253 = scmp.lt.s32.totalorder %s28, 0
          %s254 = scalar_select %p253, %s28, 0
          %s255 = smul.addr %s252, 4
          %s256 = sadd.s32 %s254, %s255
          %s257 = smul.addr %s256, 8
          %s258 = scalar_lea.vmem %s3, %s257
        $region32: #{jamba_sparse_moe_block.3} parent=23 // pred_fallthru
          _
        // Predicated region
        $region33: #{jamba_sparse_moe_block.3} parent=23 // pred_check
          %p259 = pneg %p142
        $region34: #{jamba_sparse_moe_block.3} parent=23 // pred_check_branch
          %261 = sbr.rel (%p259) target = $region36
        $region35: #{jamba_sparse_moe_block.3} parent=23 // pred_region
          %s262 = smul.u32 8, %s28
          %p263 = scmp.lt.s32.totalorder %s27, 3
          %s264 = scalar_select %p263, %s27, 3
          %p265 = scmp.lt.s32.totalorder %s262, 7
          %s266 = scalar_select %p265, %s262, 7
          %s267 = smul.addr %s264, 8
          %s268 = sadd.s32 %s266, %s267
          %s269 = smul.addr %s268, 8
          %s270 = scalar_lea.vmem %s4, %s269
          %s271 = smul.u32 8, %s28
        $region36: #{jamba_sparse_moe_block.3} parent=23 // pred_fallthru
          _
      $region24: #{jamba_sparse_moe_block.3} parent=5 // pred_fallthru
        _
      %p272 = scmp.le.s32.totalorder 1, %s19
      %p273 = scmp.lt.s32.totalorder %s19, 5
      %p274 = pnand %p272, %p273
      %p275 = pneg %p274
      // Predicated region
      $region37: #{jamba_sparse_moe_block.3} parent=5 // pred_check
        _
      $region38: #{jamba_sparse_moe_block.3} parent=5 // pred_check_branch
        %277 = sbr.rel (%p274) target = $region40
      $region39: #{jamba_sparse_moe_block.3} parent=5 // pred_region
        %s278 = ssub.s32 %s19, 1
        %s279 = smul.u32 2, %s29
        %p280 = scmp.lt.s32.totalorder %s279, 1
        %s281 = scalar_select %p280, %s279, 1
        %s282 = smul.addr %s281, 8
        %s283 = scalar_lea.vmem %s1, %s282
        %p284 = pneg %p64
        %p285 = pneg %p61
        %p286 = scmp.lt.s32.totalorder %s30, 3
        %s287 = scalar_select %p286, %s30, 3
        %p288 = scmp.lt.s32.totalorder %s31, 0
        %s289 = scalar_select %p288, %s31, 0
        %s290 = smul.addr %s287, 4
        %s291 = sadd.s32 %s289, %s290
        %s292 = smul.addr %s291, 8
        %s293 = scalar_lea.vmem %s2, %s292
        %p294 = pneg %p92
        %p295 = pneg %p89
        %p296 = scmp.lt.s32.totalorder %s30, 3
        %s297 = scalar_select %p296, %s30, 3
        %p298 = scmp.lt.s32.totalorder %s31, 0
        %s299 = scalar_select %p298, %s31, 0
        %s300 = smul.addr %s297, 4
        %s301 = sadd.s32 %s299, %s300
        %s302 = smul.addr %s301, 8
        %s303 = scalar_lea.vmem %s3, %s302
        %p304 = pneg %p120
        %p305 = pneg %p117
        %s306 = smul.u32 8, %s31
        %p307 = scmp.lt.s32.totalorder %s30, 3
        %s308 = scalar_select %p307, %s30, 3
        %p309 = scmp.lt.s32.totalorder %s306, 7
        %s310 = scalar_select %p309, %s306, 7
        %s311 = smul.addr %s308, 8
        %s312 = sadd.s32 %s310, %s311
        %s313 = smul.addr %s312, 8
        %s314 = scalar_lea.vmem %s4, %s313
        %p315 = pneg %p148
        %p316 = pneg %p145
        %s317 = smul.u32 2, %s29
        %p318 = scmp.lt.s32.totalorder %s317, 1
        %s319 = scalar_select %p318, %s317, 1
        %s320 = smul.addr %s319, 8
        %s321 = scalar_lea.vmem %s5, %s320
        %p322 = pneg %p174
        %p323 = pneg %p171
        %p324 = pneg %p200
        %p325 = pneg %p197
        %s326 = smul.u32 2, %s29
        %p327 = scmp.lt.s32.totalorder %s326, 1
        %s328 = scalar_select %p327, %s326, 1
        %s329 = smul.addr %s328, 8
        %s330 = scalar_lea.vmem %s1, %s329
        %s331 = smul.u32 2, %s29
        %p332 = scmp.lt.s32.totalorder %s30, 3
        %s333 = scalar_select %p332, %s30, 3
        %p334 = scmp.lt.s32.totalorder %s31, 0
        %s335 = scalar_select %p334, %s31, 0
        %s336 = smul.addr %s333, 4
        %s337 = sadd.s32 %s335, %s336
        %s338 = smul.addr %s337, 8
        %s339 = scalar_lea.vmem %s2, %s338
        %p340 = scmp.lt.s32.totalorder %s30, 3
        %s341 = scalar_select %p340, %s30, 3
        %p342 = scmp.lt.s32.totalorder %s31, 0
        %s343 = scalar_select %p342, %s31, 0
        %s344 = smul.addr %s341, 4
        %s345 = sadd.s32 %s343, %s344
        %s346 = smul.addr %s345, 8
        %s347 = scalar_lea.vmem %s3, %s346
        %s348 = smul.u32 8, %s31
        %p349 = scmp.lt.s32.totalorder %s30, 3
        %s350 = scalar_select %p349, %s30, 3
        %p351 = scmp.lt.s32.totalorder %s348, 7
        %s352 = scalar_select %p351, %s348, 7
        %s353 = smul.addr %s350, 8
        %s354 = sadd.s32 %s352, %s353
        %s355 = smul.addr %s354, 8
        %s356 = scalar_lea.vmem %s4, %s355
        %s357 = smul.u32 8, %s31
        %s358 = smul.u32 2, %s29
        %p359 = scmp.lt.s32.totalorder %s358, 1
        %s360 = scalar_select %p359, %s358, 1
        %s361 = smul.addr %s360, 8
        %s362 = scalar_lea.vmem %s5, %s361
        %s363 = smul.u32 2, %s29
        %s364 = smul.u32 2, %s29
        %p365 = scmp.eq.s32.totalorder %s30, 0
        %p366 = scmp.eq.s32.totalorder %s31, 0
        %p367 = pnand %p365, %p366
        %p368 = pneg %p367
        // Predicated region
        $region41: #{jamba_sparse_moe_block.3} parent=39 // pred_check
          _
        $region42: #{jamba_sparse_moe_block.3} parent=39 // pred_check_branch
          %370 = sbr.rel (%p367) target = $region44
        $region43: #{jamba_sparse_moe_block.3} parent=39 // pred_region
          %vm371 = vcmask 261120
          %372 = vst.msk [vmem:[#allocation2] sm:$0xff] %vm371, 0.0
          %373 = vst.msk [vmem:[#allocation2 + $0x8] sm:$0xff] %vm371, 0.0
        $region44: #{jamba_sparse_moe_block.3} parent=39 // pred_fallthru
          _
        %s374 = sshra.s32 %s30, 7
        %s375 = sand.u32 %s30, 127
        %s376 = sadd.s32 %s374, %s29
        %s377 = smul.u32 %s376, 128
        %s378 = sshra.s32 %s30, 7
        %s379 = sand.u32 %s30, 127
        %s380 = sadd.s32 %s377, %s379
        %s381 = sld [smem:[#allocation5 + %s380]]
        %p382 = scmp.ne.s32.totalorder %s381, 0
        // Predicated region
        $region45: #{jamba_sparse_moe_block.3} parent=39 // pred_check
          %p383 = pneg %p382
        $region46: #{jamba_sparse_moe_block.3} parent=39 // pred_check_branch
          %385 = sbr.rel (%p383) target = $region48
        $region47: #{jamba_sparse_moe_block.3} parent=39 // pred_region
          // Predicated region
          $region49: #{jamba_sparse_moe_block.3} parent=47 // pred_check
            %p386 = pneg %p366
          $region50: #{jamba_sparse_moe_block.3} parent=47 // pred_check_branch
            %388 = sbr.rel (%p386) target = $region52
          $region51: #{jamba_sparse_moe_block.3} parent=47 // pred_region
            %v389 = vld [vmem:[%s362] sm:$0xff]
            %v390 = vld [vmem:[%s362 + $0x8] sm:$0xff]
            %v391 = vlaneseq
            %v392 = vand.u32 %v391, 127
            %v393 = vstv %s30
            %vm394 = vcmp.eq.s32.totalorder %v392, %v393
            %v395 = vsel %vm394, %v389, 0.0
            %v396 = vsel %vm394, %v390, 0.0
            %vm397 = vcmask 31744
            %v398 = vsel %vm397, %v395, 0.0
            %399 = vadd.xlane.f32.xlu0 %v398
            %v400 = vpop.xlane.xlu0 %399
            %v401 = vsel %vm397, %v396, 0.0
            %402 = vadd.xlane.f32.xlu0 %v401
            %v403 = vpop.xlane.xlu0 %402
            %vm404 = vcmask 7168
            %405 = vst.msk [vmem:[#allocation3] sm:$0xff] %vm404, %v400
            %406 = vst.msk [vmem:[#allocation3 + $0x8] sm:$0xff] %vm404, %v403
          $region52: #{jamba_sparse_moe_block.3} parent=47 // pred_fallthru
            _
          %v407 = vld [vmem:[%s330] sm:$0xff]
          %v408 = vld [vmem:[%s330 + $0x8] sm:$0xff]
          %v409 = vld [vmem:[%s339] sm:$0xff]
          %v410 = vld [vmem:[%s339 + $0x8] sm:$0xff]
          %v411 = vld [vmem:[%s339 + $0x10] sm:$0xff]
          %v412 = vld [vmem:[%s339 + $0x18] sm:$0xff]
          %vm413 = vcmask 261120
          %v415 = vsel %vm413, %v407, 0
          %v418 = vsel %vm413, %v408, 0
          %420 = vmatprep.subr.mxu0 0.0
          %421 = vmatpush1.msra.mxu0 %v409
          %422 = vmatprep.subr.mxu0 0.0
          %423 = vmatpush1.msra.mxu0 %v410
          %424 = vmatprep.subr.mxu0 0.0
          %425 = vmatpush1.msra.mxu0 %v411
          %426 = vmatprep.subr.mxu0 0.0
          %427 = vmatpush1.msra.mxu0 %v412
          %428 = vmatprep.subr.mxu0 0.0
          %429 = vmatpush1.msra.mxu0 0.0
          %430 = vmatprep.subr.mxu0 0.0
          %431 = vmatpush1.msra.mxu0 0.0
          %432 = vmatprep.subr.mxu0 0.0
          %433 = vmatpush1.msra.mxu0 0.0
          %434 = vmatprep.subr.mxu0 0.0
          %435 = vmatpush1.msra.mxu0 0.0
          %436 = vmatprep.subr.mxu0 0.0
          %437 = vmatpush1.msra.mxu0 0.0
          %438 = vmatprep.subr.mxu0 0.0
          %439 = vmatpush1.msra.mxu0 0.0
          %440 = vmatprep.subr.mxu0 0.0
          %441 = vmatpush1.msra.mxu0 0.0
          %442 = vmatprep.subr.mxu0 0.0
          %443 = vmatpush1.msra.mxu0 0.0
          %444 = vmatprep.subr.mxu0 0.0
          %445 = vmatpush1.msra.mxu0 0.0
          %446 = vmatprep.subr.mxu0 0.0
          %447 = vmatpush1.msra.mxu0 0.0
          %448 = vmatprep.subr.mxu0 0.0
          %449 = vmatpush1.msra.mxu0 0.0
          %450 = vmatprep.subr.mxu0 0.0
          %451 = vmatpush1.msra.mxu0 0.0
          %452 = vmatprep.subr.mxu0 0.0
          %453 = vmatpush1.msra.mxu0 0.0
          %454 = vmatprep.subr.mxu0 0.0
          %455 = vmatpush1.msra.mxu0 0.0
          %456 = vmatprep.subr.mxu0 0.0
          %457 = vmatpush1.msra.mxu0 0.0
          %458 = vmatprep.subr.mxu0 0.0
          %459 = vmatpush1.msra.mxu0 0.0
          %460 = vmatprep.subr.mxu0 0.0
          %461 = vmatpush1.msra.mxu0 0.0
          %462 = vmatprep.subr.mxu0 0.0
          %463 = vmatpush1.msra.mxu0 0.0
          %464 = vmatprep.subr.mxu0 0.0
          %465 = vmatpush1.msra.mxu0 0.0
          %466 = vmatprep.subr.mxu0 0.0
          %467 = vmatpush1.msra.mxu0 0.0
          %468 = vmatprep.subr.mxu0 0.0
          %469 = vmatpush1.msra.mxu0 0.0
          %470 = vmatprep.subr.mxu0 0.0
          %471 = vmatpush1.msra.mxu0 0.0
          %472 = vmatprep.subr.mxu0 0.0
          %473 = vmatpush1.msra.mxu0 0.0
          %474 = vmatprep.subr.mxu0 0.0
          %475 = vmatpush1.msra.mxu0 0.0
          %476 = vmatprep.subr.mxu0 0.0
          %477 = vmatpush1.msra.mxu0 0.0
          %478 = vmatprep.subr.mxu0 0.0
          %479 = vmatpush1.msra.mxu0 0.0
          %480 = vmatprep.subr.mxu0 0.0
          %481 = vmatpush1.msra.mxu0 0.0
          %482 = vmatprep.subr.mxu0 0.0
          %483 = vmatpush1.msra.mxu0 0.0
          %484 = vmatprep.mubr.f32.mxu0 0.0
          %485 = vmatmul.mubr.f32.gmra.mrb[0].mxu0 %v415
          %v486 = vpop.f32.mrb[0].mxu0
          %v487 = vadd.f32 0.0, %v486
          %v488 = vpop.f32.mrb[0].mxu0
          %489 = vmatprep.mubr.f32.mxu0 0.0
          %490 = vmatmul.mubr.f32.gmra.mrb[0].mxu0 %v418
          %v491 = vpop.f32.mrb[0].mxu0
          %v492 = vadd.f32 0.0, %v491
          %v493 = vpop.f32.mrb[0].mxu0
          %494 = vdwg.mxu0
          %v495 = vld [vmem:[%s347] sm:$0xff]
          %v496 = vld [vmem:[%s347 + $0x8] sm:$0xff]
          %v497 = vld [vmem:[%s347 + $0x10] sm:$0xff]
          %v498 = vld [vmem:[%s347 + $0x18] sm:$0xff]
          %499 = vmatprep.subr.mxu0 0.0
          %500 = vmatpush1.msra.mxu0 %v495
          %501 = vmatprep.subr.mxu0 0.0
          %502 = vmatpush1.msra.mxu0 %v496
          %503 = vmatprep.subr.mxu0 0.0
          %504 = vmatpush1.msra.mxu0 %v497
          %505 = vmatprep.subr.mxu0 0.0
          %506 = vmatpush1.msra.mxu0 %v498
          %507 = vmatprep.subr.mxu0 0.0
          %508 = vmatpush1.msra.mxu0 0.0
          %509 = vmatprep.subr.mxu0 0.0
          %510 = vmatpush1.msra.mxu0 0.0
          %511 = vmatprep.subr.mxu0 0.0
          %512 = vmatpush1.msra.mxu0 0.0
          %513 = vmatprep.subr.mxu0 0.0
          %514 = vmatpush1.msra.mxu0 0.0
          %515 = vmatprep.subr.mxu0 0.0
          %516 = vmatpush1.msra.mxu0 0.0
          %517 = vmatprep.subr.mxu0 0.0
          %518 = vmatpush1.msra.mxu0 0.0
          %519 = vmatprep.subr.mxu0 0.0
          %520 = vmatpush1.msra.mxu0 0.0
          %521 = vmatprep.subr.mxu0 0.0
          %522 = vmatpush1.msra.mxu0 0.0
          %523 = vmatprep.subr.mxu0 0.0
          %524 = vmatpush1.msra.mxu0 0.0
          %525 = vmatprep.subr.mxu0 0.0
          %526 = vmatpush1.msra.mxu0 0.0
          %527 = vmatprep.subr.mxu0 0.0
          %528 = vmatpush1.msra.mxu0 0.0
          %529 = vmatprep.subr.mxu0 0.0
          %530 = vmatpush1.msra.mxu0 0.0
          %531 = vmatprep.subr.mxu0 0.0
          %532 = vmatpush1.msra.mxu0 0.0
          %533 = vmatprep.subr.mxu0 0.0
          %534 = vmatpush1.msra.mxu0 0.0
          %535 = vmatprep.subr.mxu0 0.0
          %536 = vmatpush1.msra.mxu0 0.0
          %537 = vmatprep.subr.mxu0 0.0
          %538 = vmatpush1.msra.mxu0 0.0
          %539 = vmatprep.subr.mxu0 0.0
          %540 = vmatpush1.msra.mxu0 0.0
          %541 = vmatprep.subr.mxu0 0.0
          %542 = vmatpush1.msra.mxu0 0.0
          %543 = vmatprep.subr.mxu0 0.0
          %544 = vmatpush1.msra.mxu0 0.0
          %545 = vmatprep.subr.mxu0 0.0
          %546 = vmatpush1.msra.mxu0 0.0
          %547 = vmatprep.subr.mxu0 0.0
          %548 = vmatpush1.msra.mxu0 0.0
          %549 = vmatprep.subr.mxu0 0.0
          %550 = vmatpush1.msra.mxu0 0.0
          %551 = vmatprep.subr.mxu0 0.0
          %552 = vmatpush1.msra.mxu0 0.0
          %553 = vmatprep.subr.mxu0 0.0
          %554 = vmatpush1.msra.mxu0 0.0
          %555 = vmatprep.subr.mxu0 0.0
          %556 = vmatpush1.msra.mxu0 0.0
          %557 = vmatprep.subr.mxu0 0.0
          %558 = vmatpush1.msra.mxu0 0.0
          %559 = vmatprep.subr.mxu0 0.0
          %560 = vmatpush1.msra.mxu0 0.0
          %561 = vmatprep.subr.mxu0 0.0
          %562 = vmatpush1.msra.mxu0 0.0
          %563 = vmatprep.mubr.f32.mxu0 0.0
          %564 = vmatmul.mubr.f32.gmra.mrb[0].mxu0 %v415
          %v565 = vpop.f32.mrb[0].mxu0
          %v566 = vadd.f32 0.0, %v565
          %v567 = vpop.f32.mrb[0].mxu0
          %568 = vmatprep.mubr.f32.mxu0 0.0
          %569 = vmatmul.mubr.f32.gmra.mrb[0].mxu0 %v418
          %v570 = vpop.f32.mrb[0].mxu0
          %v571 = vadd.f32 0.0, %v570
          %v572 = vpop.f32.mrb[0].mxu0
          %573 = vdwg.mxu0
          %v574 = vxor.u32 %v487, 2147483648
          %v575 = vxor.u32 %v492, 2147483648
          %v576 = vmul.f32 %v574, 1.442695
          %v577 = vpow.pop %v576
          %v578 = vmul.f32 %v575, 1.442695
          %v579 = vpow.pop %v578
          %v580 = vadd.f32 %v577, 1.0
          %v581 = vadd.f32 %v579, 1.0
          %v582 = vrcp.pop %v580
          %v583 = vmul.f32 1.0, %v582
          %v584 = vrcp.pop %v581
          %v585 = vmul.f32 1.0, %v584
          %v586 = vmul.f32 %v487, %v583
          %v587 = vmul.f32 %v492, %v585
          %v588 = vmul.f32 %v586, %v566
          %v589 = vmul.f32 %v587, %v571
          %v590 = vld [vmem:[#allocation3] sm:$0xff]
          %v591 = vld [vmem:[#allocation3 + $0x8] sm:$0xff]
          %593 = vset.pattern.permute.xlu0 0
          %594 = vperm.xlu0 %593, %v590
          %v595 = vpop.permute.xlu0 %594
          %598 = vset.pattern.permute.xlu0 0
          %599 = vperm.xlu0 %598, %v591
          %v600 = vpop.permute.xlu0 %599
          %v602 = vmul.f32 %v588, %v595
          %v603 = vmul.f32 %v589, %v600
          %v604 = vld [vmem:[#allocation2] sm:$0xff]
          %v605 = vld [vmem:[#allocation2 + $0x8] sm:$0xff]
          %v606 = vld [vmem:[%s356] sm:$0xff]
          %v607 = vld [vmem:[%s356 + $0x8] sm:$0xff]
          %v608 = vld [vmem:[%s356 + $0x10] sm:$0xff]
          %v609 = vld [vmem:[%s356 + $0x18] sm:$0xff]
          %v610 = vld [vmem:[%s356 + $0x20] sm:$0xff]
          %v611 = vld [vmem:[%s356 + $0x28] sm:$0xff]
          %v612 = vld [vmem:[%s356 + $0x30] sm:$0xff]
          %v613 = vld [vmem:[%s356 + $0x38] sm:$0xff]
          %vm614 = vcmask 523264
          %v616 = vsel %vm614, %v602, 0
          %v619 = vsel %vm614, %v603, 0
          %621 = vmatprep.subr.mxu0 0.0
          %622 = vmatpush1.msra.mxu0 %v606
          %623 = vmatprep.subr.mxu0 0.0
          %624 = vmatpush1.msra.mxu0 %v607
          %625 = vmatprep.subr.mxu0 0.0
          %626 = vmatpush1.msra.mxu0 %v608
          %627 = vmatprep.subr.mxu0 0.0
          %628 = vmatpush1.msra.mxu0 %v609
          %629 = vmatprep.subr.mxu0 0.0
          %630 = vmatpush1.msra.mxu0 %v610
          %631 = vmatprep.subr.mxu0 0.0
          %632 = vmatpush1.msra.mxu0 %v611
          %633 = vmatprep.subr.mxu0 0.0
          %634 = vmatpush1.msra.mxu0 %v612
          %635 = vmatprep.subr.mxu0 0.0
          %636 = vmatpush1.msra.mxu0 %v613
          %637 = vmatprep.subr.mxu0 0.0
          %638 = vmatpush1.msra.mxu0 0.0
          %639 = vmatprep.subr.mxu0 0.0
          %640 = vmatpush1.msra.mxu0 0.0
          %641 = vmatprep.subr.mxu0 0.0
          %642 = vmatpush1.msra.mxu0 0.0
          %643 = vmatprep.subr.mxu0 0.0
          %644 = vmatpush1.msra.mxu0 0.0
          %645 = vmatprep.subr.mxu0 0.0
          %646 = vmatpush1.msra.mxu0 0.0
          %647 = vmatprep.subr.mxu0 0.0
          %648 = vmatpush1.msra.mxu0 0.0
          %649 = vmatprep.subr.mxu0 0.0
          %650 = vmatpush1.msra.mxu0 0.0
          %651 = vmatprep.subr.mxu0 0.0
          %652 = vmatpush1.msra.mxu0 0.0
          %653 = vmatprep.subr.mxu0 0.0
          %654 = vmatpush1.msra.mxu0 0.0
          %655 = vmatprep.subr.mxu0 0.0
          %656 = vmatpush1.msra.mxu0 0.0
          %657 = vmatprep.subr.mxu0 0.0
          %658 = vmatpush1.msra.mxu0 0.0
          %659 = vmatprep.subr.mxu0 0.0
          %660 = vmatpush1.msra.mxu0 0.0
          %661 = vmatprep.subr.mxu0 0.0
          %662 = vmatpush1.msra.mxu0 0.0
          %663 = vmatprep.subr.mxu0 0.0
          %664 = vmatpush1.msra.mxu0 0.0
          %665 = vmatprep.subr.mxu0 0.0
          %666 = vmatpush1.msra.mxu0 0.0
          %667 = vmatprep.subr.mxu0 0.0
          %668 = vmatpush1.msra.mxu0 0.0
          %669 = vmatprep.subr.mxu0 0.0
          %670 = vmatpush1.msra.mxu0 0.0
          %671 = vmatprep.subr.mxu0 0.0
          %672 = vmatpush1.msra.mxu0 0.0
          %673 = vmatprep.subr.mxu0 0.0
          %674 = vmatpush1.msra.mxu0 0.0
          %675 = vmatprep.subr.mxu0 0.0
          %676 = vmatpush1.msra.mxu0 0.0
          %677 = vmatprep.subr.mxu0 0.0
          %678 = vmatpush1.msra.mxu0 0.0
          %679 = vmatprep.subr.mxu0 0.0
          %680 = vmatpush1.msra.mxu0 0.0
          %681 = vmatprep.subr.mxu0 0.0
          %682 = vmatpush1.msra.mxu0 0.0
          %683 = vmatprep.subr.mxu0 0.0
          %684 = vmatpush1.msra.mxu0 0.0
          %685 = vmatprep.mubr.f32.mxu0 0.0
          %686 = vmatmul.mubr.f32.gmra.mrb[0].mxu0 %v616
          %v687 = vpop.f32.mrb[0].mxu0
          %v688 = vadd.f32 0.0, %v687
          %v689 = vpop.f32.mrb[0].mxu0
          %690 = vmatprep.mubr.f32.mxu0 0.0
          %691 = vmatmul.mubr.f32.gmra.mrb[0].mxu0 %v619
          %v692 = vpop.f32.mrb[0].mxu0
          %v693 = vadd.f32 0.0, %v692
          %v694 = vpop.f32.mrb[0].mxu0
          %695 = vdwg.mxu0
          %v696 = vadd.f32 %v604, %v688
          %v697 = vadd.f32 %v605, %v693
          %698 = vst.msk [vmem:[#allocation2] sm:$0xff] %vm413, %v696
          %699 = vst.msk [vmem:[#allocation2 + $0x8] sm:$0xff] %vm413, %v697
        $region48: #{jamba_sparse_moe_block.3} parent=39 // pred_fallthru
          _
        %p700 = scmp.eq.s32.totalorder %s30, 3
        %p701 = pnand %p700, %p366
        %p702 = pneg %p701
        // Predicated region
        $region53: #{jamba_sparse_moe_block.3} parent=39 // pred_check
          _
        $region54: #{jamba_sparse_moe_block.3} parent=39 // pred_check_branch
          %704 = sbr.rel (%p701) target = $region56
        $region55: #{jamba_sparse_moe_block.3} parent=39 // pred_region
          %v705 = vld [vmem:[#allocation2] sm:$0xff]
          %v706 = vld [vmem:[#allocation2 + $0x8] sm:$0xff]
          %vm707 = vcmask 261120
          %708 = vst.msk [vmem:[#allocation6] sm:$0xff] %vm707, %v705
          %709 = vst.msk [vmem:[#allocation6 + $0x8] sm:$0xff] %vm707, %v706
        $region56: #{jamba_sparse_moe_block.3} parent=39 // pred_fallthru
          _
        // Predicated region
        $region57: #{jamba_sparse_moe_block.3} parent=39 // pred_check
          %p710 = pneg %p197
        $region58: #{jamba_sparse_moe_block.3} parent=39 // pred_check_branch
          %712 = sbr.rel (%p710) target = $region60
        $region59: #{jamba_sparse_moe_block.3} parent=39 // pred_region
          %s713 = smul.u32 2, %s29
          %s715 = ssub.s32 256, 256
          %716 = vsyncadd [#allocation7], %s715
          %s717 = smul.addr %s713, 128
          %s718 = scalar_lea.hbm %s6, %s717
          %s719 = sshll.u32 [#allocation6], 4
          %s720 = int_to_ptr.vmem [resolvable:$true] %s719
          %725 = dma.vmem_to_hbm [thread:$0]  %s720, 256, %s718, [#allocation7], 128, 128, 8
        $region60: #{jamba_sparse_moe_block.3} parent=39 // pred_fallthru
          _
        // Predicated region
        $region61: #{jamba_sparse_moe_block.3} parent=39 // pred_check
          %p726 = pneg %p197
        $region62: #{jamba_sparse_moe_block.3} parent=39 // pred_check_branch
          %728 = sbr.rel (%p726) target = $region64
        $region63: #{jamba_sparse_moe_block.3} parent=39 // pred_region
          %729 = dma.done [#allocation7], 256
        $region64: #{jamba_sparse_moe_block.3} parent=39 // pred_fallthru
          _
      $region40: #{jamba_sparse_moe_block.3} parent=5 // pred_fallthru
        _
      %p730 = scmp.le.s32.totalorder 2, %s19
      // Predicated region
      $region65: #{jamba_sparse_moe_block.3} parent=5 // pred_check
        %p731 = pneg %p730
      $region66: #{jamba_sparse_moe_block.3} parent=5 // pred_check_branch
        %733 = sbr.rel (%p731) target = $region68
      $region67: #{jamba_sparse_moe_block.3} parent=5 // pred_region
        %s734 = ssub.s32 %s19, 2
      $region68: #{jamba_sparse_moe_block.3} parent=5 // pred_fallthru
        _
    $region6: #{jamba_sparse_moe_block.3} parent=1 // loop_footer
      %s23 = sadd.s32 1, %s19
    $region7: #{jamba_sparse_moe_block.3} parent=1 // loop_footer_branch
      %18 = sbr.rel target = $region3
    $region8: #{jamba_sparse_moe_block.3} parent=1 // loop_exit
      _
    %735 = vsyncpa [#allocation7], 1
    %s736 = scalar_lea.sflag [#allocation7], 1
    %737 = vsyncpa %s736, 1

</llo_original>
